<compile_context>
chip_gen: v5e
topology: v5e:2x2
jax: 0.10.0
libtpu: 0.0.40
codegen_flags: <defaults>
</compile_context>

<pallas_src>
import jax
import jax.numpy as jnp
import numpy as np
from jax.experimental import pallas as pl
from jax.experimental.pallas import tpu as pltpu

NO, PT, RPT, TTD = 3, 6, 11, 16      # segment boundaries from StateProcessor
NSEG = 4                             # number of normalized segments
EPS = 1e-5                           # InstanceNorm1d default eps


def _seg_lo(s):
    z = jnp.zeros_like(s)
    return jnp.where(s == 0, z, jnp.where(s == 1, z + NO, jnp.where(s == 2, z + PT, z + RPT)))


def _seg_hi(s):
    z = jnp.zeros_like(s)
    return jnp.where(s == 0, z + NO, jnp.where(s == 1, z + PT, jnp.where(s == 2, z + RPT, z + TTD)))


def actor_kernel(x_ref, w1_ref, b1_ref, w2_ref, b2_ref, w3_ref, b3_ref,
                 w4_ref, b4_ref, o_ref):
    x = x_ref[...]                                   # (tb, D) f32
    tb, D = x.shape

    # ---- StateProcessor as masked one-hot matmuls (no lane slices / concat) ----
    # S  : (D, NSEG) membership of lane d in segment s (all-zero rows for d >= TTD)
    # St : (NSEG, D) its transpose, built directly from iotas (no in-kernel transpose)
    d_c = jax.lax.broadcasted_iota(jnp.int32, (D, NSEG), 0)
    s_c = jax.lax.broadcasted_iota(jnp.int32, (D, NSEG), 1)
    S = ((d_c >= _seg_lo(s_c)) & (d_c < _seg_hi(s_c))).astype(jnp.float32)

    d_r = jax.lax.broadcasted_iota(jnp.int32, (NSEG, D), 1)
    s_r = jax.lax.broadcasted_iota(jnp.int32, (NSEG, D), 0)
    St = ((d_r >= _seg_lo(s_r)) & (d_r < _seg_hi(s_r))).astype(jnp.float32)

    s_v = jax.lax.broadcasted_iota(jnp.int32, (1, NSEG), 1)
    inv_cnt = 1.0 / (_seg_hi(s_v) - _seg_lo(s_v)).astype(jnp.float32)         # (1, NSEG)

    seg_mean = jnp.dot(x, S, preferred_element_type=jnp.float32) * inv_cnt    # (tb, NSEG)
    mean_lane = jnp.dot(seg_mean, St, preferred_element_type=jnp.float32)     # (tb, D); 0 past TTD
    centered = x - mean_lane
    seg_var = jnp.dot(centered * centered, S,                                 # biased variance
                      preferred_element_type=jnp.float32) * inv_cnt
    inv_std = jax.lax.rsqrt(seg_var + EPS)                                    # (tb, NSEG)
    inv_std_lane = jnp.dot(inv_std, St, preferred_element_type=jnp.float32)   # 0 past TTD
    lane = jax.lax.broadcasted_iota(jnp.int32, (tb, D), 1)
    feat = jnp.where(lane < TTD, centered * inv_std_lane, x)                  # concat-free blend

    # ---- policy_net MLP ----
    h = jnp.tanh(jnp.dot(feat, w1_ref[...], preferred_element_type=jnp.float32) + b1_ref[...])
    h = jnp.tanh(jnp.dot(h, w2_ref[...], preferred_element_type=jnp.float32) + b2_ref[...])
    h = jnp.tanh(jnp.dot(h, w3_ref[...], preferred_element_type=jnp.float32) + b3_ref[...])
    out = jnp.dot(h, w4_ref[...], preferred_element_type=jnp.float32) + b4_ref[...]
    o_ref[...] = out.astype(o_ref.dtype)


def _round_up(n, m):
    return ((n + m - 1) // m) * m


def actor_forward(x, params, *, tile_b=256):
    """x: (B, 1, D) float32 (NCL like PyTorch). Returns logits (B, output_size)."""
    w1, b1, w2, b2, w3, b3, w4, b4 = params
    x2 = x[:, 0, :]                                  # (B, D) — glue reshape
    B, D = x2.shape
    out_size = w4.shape[1]

    # MXU-sized batch tiles (review: >=128; 256-multiples match v6e/v7x cadence),
    # shrunk to a sublane multiple of 8 when the batch itself is small, and the
    # batch zero-padded up so ragged B works (zero rows normalize to zero — no NaNs).
    tb = max(8, min(_round_up(tile_b, 8), _round_up(B, 8)))
    Bp = _round_up(B, tb)
    if Bp != B:
        x2 = jnp.pad(x2, ((0, Bp - B), (0, 0)))

    full = lambda a: pl.BlockSpec(a.shape, lambda i, _n=a.ndim: (0,) * _n)

    # Advisory cost so XLA overlaps neighbouring ops with this small kernel.
    n_weight_elems = sum(int(np.prod(p.shape)) for p in params)
    mlp_flops = 2 * Bp * (D * 48 + 48 * 36 + 36 * 36 + 36 * out_size)
    seg_flops = 2 * Bp * (4 * NSEG * D)              # x@S, c^2@S, mean@St, inv_std@St
    cost = pl.CostEstimate(
        flops=mlp_flops + seg_flops,
        transcendentals=Bp * (48 + 36 + 36 + NSEG),
        bytes_accessed=4 * (Bp * (D + out_size) + n_weight_elems),
    )

    # Per-step VMEM estimate (lane-padded, double-buffered tiles + resident weights);
    # only raise the scoped limit when a huge tile needs it (safe across v5e/v6e/v7x).
    lanes = lambda n: max(_round_up(n, 128), 128)
    vmem_need = 4 * (2 * tb * lanes(D) + 2 * tb * lanes(out_size)
                     + 2 * tb * lanes(48) + 2 * n_weight_elems)
    extra = {}
    if vmem_need > 12 * 1024 * 1024:
        extra["vmem_limit_bytes"] = int(min(2 * vmem_need, 48 * 1024 * 1024))

    out = pl.pallas_call(
        actor_kernel,
        out_shape=jax.ShapeDtypeStruct((Bp, out_size), jnp.float32),
        grid=(Bp // tb,),
        in_specs=[
            pl.BlockSpec((tb, D), lambda i: (i, 0)),     # batch-tiled activations
            full(w1), full(b1), full(w2), full(b2),
            full(w3), full(b3), full(w4), full(b4),      # weights resident across steps
        ],
        out_specs=pl.BlockSpec((tb, out_size), lambda i: (i, 0)),
        compiler_params=pltpu.CompilerParams(
            dimension_semantics=("parallel",), **extra),
        cost_estimate=cost,
    )(x2, w1, b1, w2, b2, w3, b3, w4, b4)
    return out[:B] if Bp != B else out


def init_params(key, input_size, output_size):
    """Mirrors nn.Linear defaults; last layer orthogonal_(gain=0.01) with sign fix, bias 0.
    Weights stored transposed: (in_features, out_features)."""
    dims = [(input_size, 48), (48, 36), (36, 36), (36, output_size)]
    params = []
    keys = jax.random.split(key, 8)
    for li, (fin, fout) in enumerate(dims):
        kw, kb = keys[2 * li], keys[2 * li + 1]
        if li < 3:
            bound = 1.0 / np.sqrt(fin)
            w = jax.random.uniform(kw, (fin, fout), jnp.float32, -bound, bound)
            b = jax.random.uniform(kb, (1, fout), jnp.float32, -bound, bound)
        else:
            g = jax.random.normal(kw, (fin, fout), jnp.float32)
            q, r = jnp.linalg.qr(g)
            q = q * jnp.sign(jnp.diagonal(r))[None, :]   # PyTorch orthogonal_ sign correction
            w = 0.01 * q
            b = jnp.zeros((1, fout), jnp.float32)
        params += [w, b]
    return tuple(params)


def reference_forward(x, params):
    """Pure-JAX reference implementing the PyTorch semantics directly (independent of
    the kernel's formulation): per-segment InstanceNorm1d(affine=False) with biased
    variance and eps=1e-5, concat with the raw tail, then the 4-layer tanh MLP."""
    w1, b1, w2, b2, w3, b3, w4, b4 = params
    x2 = x[:, 0, :]

    def norm(seg):
        mu = seg.mean(axis=-1, keepdims=True)
        var = ((seg - mu) ** 2).mean(axis=-1, keepdims=True)     # biased, like InstanceNorm1d
        return (seg - mu) / jnp.sqrt(var + EPS)

    feat = jnp.concatenate(
        [norm(x2[:, 0:NO]), norm(x2[:, NO:PT]), norm(x2[:, PT:RPT]),
         norm(x2[:, RPT:TTD]), x2[:, TTD:]], axis=-1)
    hp = jax.lax.Precision.HIGHEST
    h = jnp.tanh(jnp.dot(feat, w1, precision=hp) + b1)
    h = jnp.tanh(jnp.dot(h, w2, precision=hp) + b2)
    h = jnp.tanh(jnp.dot(h, w3, precision=hp) + b3)
    return jnp.dot(h, w4, precision=hp) + b4


if __name__ == "__main__":
    # input_size must exceed 16; ragged B exercises the padding path.
    B, INPUT_SIZE, OUTPUT_SIZE = 50, 24, 8
    key = jax.random.PRNGKey(0)
    kx, kp = jax.random.split(key)
    x = jax.random.normal(kx, (B, 1, INPUT_SIZE), jnp.float32)
    params = init_params(kp, INPUT_SIZE, OUTPUT_SIZE)

    logits = jax.block_until_ready(actor_forward(x, params))
    ref = jax.block_until_ready(reference_forward(x, params))

    assert logits.shape == (B, OUTPUT_SIZE)
    np.testing.assert_allclose(np.asarray(logits), np.asarray(ref), atol=2e-4, rtol=2e-4)
    # TODO(synk): get_log_prob (Categorical log-prob) is a trivial log_softmax-gather on
    # the returned logits and is left to plain JAX outside the kernel.
    print("KERNEL_OK")
</pallas_src>

<mosaic_0001>
module attributes {stable_mosaic.version = 11 : i64} {
  func.func @actor_kernel(%arg0: i32, %arg1: memref<56x24xf32, #tpu.memory_space<vmem>>, %arg2: memref<24x48xf32, #tpu.memory_space<vmem>>, %arg3: memref<1x48xf32, #tpu.memory_space<vmem>>, %arg4: memref<48x36xf32, #tpu.memory_space<vmem>>, %arg5: memref<1x36xf32, #tpu.memory_space<vmem>>, %arg6: memref<36x36xf32, #tpu.memory_space<vmem>>, %arg7: memref<1x36xf32, #tpu.memory_space<vmem>>, %arg8: memref<36x8xf32, #tpu.memory_space<vmem>>, %arg9: memref<1x8xf32, #tpu.memory_space<vmem>>, %arg10: memref<56x8xf32, #tpu.memory_space<vmem>>) attributes {dimension_semantics = [#tpu.dimension_semantics<parallel>], iteration_bounds = array<i64: 1>, scalar_prefetch = 0 : i64, scratch_operands = 0 : i64, tpu.core_type = #tpu.core_type<tc>, window_params = [{transform_indices = @transform_0, window_bounds = array<i64: 56, 24>}, {pipeline_mode = #tpu.pipeline_mode<synchronous>, transform_indices = @transform_1, window_bounds = array<i64: 24, 48>}, {pipeline_mode = #tpu.pipeline_mode<synchronous>, transform_indices = @transform_2, window_bounds = array<i64: 1, 48>}, {pipeline_mode = #tpu.pipeline_mode<synchronous>, transform_indices = @transform_3, window_bounds = array<i64: 48, 36>}, {pipeline_mode = #tpu.pipeline_mode<synchronous>, transform_indices = @transform_4, window_bounds = array<i64: 1, 36>}, {pipeline_mode = #tpu.pipeline_mode<synchronous>, transform_indices = @transform_5, window_bounds = array<i64: 36, 36>}, {pipeline_mode = #tpu.pipeline_mode<synchronous>, transform_indices = @transform_6, window_bounds = array<i64: 1, 36>}, {pipeline_mode = #tpu.pipeline_mode<synchronous>, transform_indices = @transform_7, window_bounds = array<i64: 36, 8>}, {pipeline_mode = #tpu.pipeline_mode<synchronous>, transform_indices = @transform_8, window_bounds = array<i64: 1, 8>}, {transform_indices = @transform_9, window_bounds = array<i64: 56, 8>}]} {
    %c0 = arith.constant 0 : index
    %c0_0 = arith.constant 0 : index
    %0 = vector.load %arg1[%c0, %c0_0] : memref<56x24xf32, #tpu.memory_space<vmem>>, vector<56x24xf32>
    %1 = tpu.iota {dimensions = array<i32: 0>} : vector<24x4xi32>
    %2 = tpu.iota {dimensions = array<i32: 1>} : vector<24x4xi32>
    %c0_i32 = arith.constant 0 : i32
    %3 = vector.broadcast %c0_i32 : i32 to vector<24x4xi32>
    %c0_i32_1 = arith.constant 0 : i32
    %4 = vector.broadcast %c0_i32_1 : i32 to vector<24x4xi32>
    %5 = arith.cmpi eq, %2, %4 : vector<24x4xi32>
    %c1_i32 = arith.constant 1 : i32
    %6 = vector.broadcast %c1_i32 : i32 to vector<24x4xi32>
    %7 = arith.cmpi eq, %2, %6 : vector<24x4xi32>
    %c3_i32 = arith.constant 3 : i32
    %8 = vector.broadcast %c3_i32 : i32 to vector<24x4xi32>
    %9 = arith.addi %3, %8 : vector<24x4xi32>
    %c2_i32 = arith.constant 2 : i32
    %10 = vector.broadcast %c2_i32 : i32 to vector<24x4xi32>
    %11 = arith.cmpi eq, %2, %10 : vector<24x4xi32>
    %c6_i32 = arith.constant 6 : i32
    %12 = vector.broadcast %c6_i32 : i32 to vector<24x4xi32>
    %13 = arith.addi %3, %12 : vector<24x4xi32>
    %c11_i32 = arith.constant 11 : i32
    %14 = vector.broadcast %c11_i32 : i32 to vector<24x4xi32>
    %15 = arith.addi %3, %14 : vector<24x4xi32>
    %16 = arith.select %11, %13, %15 : vector<24x4xi1>, vector<24x4xi32>
    %17 = arith.select %7, %9, %16 : vector<24x4xi1>, vector<24x4xi32>
    %18 = arith.select %5, %3, %17 : vector<24x4xi1>, vector<24x4xi32>
    %19 = arith.cmpi sge, %1, %18 : vector<24x4xi32>
    %c0_i32_2 = arith.constant 0 : i32
    %20 = vector.broadcast %c0_i32_2 : i32 to vector<24x4xi32>
    %c0_i32_3 = arith.constant 0 : i32
    %21 = vector.broadcast %c0_i32_3 : i32 to vector<24x4xi32>
    %22 = arith.cmpi eq, %2, %21 : vector<24x4xi32>
    %c3_i32_4 = arith.constant 3 : i32
    %23 = vector.broadcast %c3_i32_4 : i32 to vector<24x4xi32>
    %24 = arith.addi %20, %23 : vector<24x4xi32>
    %c1_i32_5 = arith.constant 1 : i32
    %25 = vector.broadcast %c1_i32_5 : i32 to vector<24x4xi32>
    %26 = arith.cmpi eq, %2, %25 : vector<24x4xi32>
    %c6_i32_6 = arith.constant 6 : i32
    %27 = vector.broadcast %c6_i32_6 : i32 to vector<24x4xi32>
    %28 = arith.addi %20, %27 : vector<24x4xi32>
    %c2_i32_7 = arith.constant 2 : i32
    %29 = vector.broadcast %c2_i32_7 : i32 to vector<24x4xi32>
    %30 = arith.cmpi eq, %2, %29 : vector<24x4xi32>
    %c11_i32_8 = arith.constant 11 : i32
    %31 = vector.broadcast %c11_i32_8 : i32 to vector<24x4xi32>
    %32 = arith.addi %20, %31 : vector<24x4xi32>
    %c16_i32 = arith.constant 16 : i32
    %33 = vector.broadcast %c16_i32 : i32 to vector<24x4xi32>
    %34 = arith.addi %20, %33 : vector<24x4xi32>
    %35 = arith.select %30, %32, %34 : vector<24x4xi1>, vector<24x4xi32>
    %36 = arith.select %26, %28, %35 : vector<24x4xi1>, vector<24x4xi32>
    %37 = arith.select %22, %24, %36 : vector<24x4xi1>, vector<24x4xi32>
    %38 = arith.cmpi slt, %1, %37 : vector<24x4xi32>
    %39 = arith.andi %19, %38 : vector<24x4xi1>
    %40 = arith.extui %39 : vector<24x4xi1> to vector<24x4xi32>
    %41 = arith.sitofp %40 : vector<24x4xi32> to vector<24x4xf32>
    %42 = tpu.iota {dimensions = array<i32: 1>} : vector<4x24xi32>
    %43 = tpu.iota {dimensions = array<i32: 0>} : vector<4x24xi32>
    %c0_i32_9 = arith.constant 0 : i32
    %44 = vector.broadcast %c0_i32_9 : i32 to vector<4x24xi32>
    %c0_i32_10 = arith.constant 0 : i32
    %45 = vector.broadcast %c0_i32_10 : i32 to vector<4x24xi32>
    %46 = arith.cmpi eq, %43, %45 : vector<4x24xi32>
    %c1_i32_11 = arith.constant 1 : i32
    %47 = vector.broadcast %c1_i32_11 : i32 to vector<4x24xi32>
    %48 = arith.cmpi eq, %43, %47 : vector<4x24xi32>
    %c3_i32_12 = arith.constant 3 : i32
    %49 = vector.broadcast %c3_i32_12 : i32 to vector<4x24xi32>
    %50 = arith.addi %44, %49 : vector<4x24xi32>
    %c2_i32_13 = arith.constant 2 : i32
    %51 = vector.broadcast %c2_i32_13 : i32 to vector<4x24xi32>
    %52 = arith.cmpi eq, %43, %51 : vector<4x24xi32>
    %c6_i32_14 = arith.constant 6 : i32
    %53 = vector.broadcast %c6_i32_14 : i32 to vector<4x24xi32>
    %54 = arith.addi %44, %53 : vector<4x24xi32>
    %c11_i32_15 = arith.constant 11 : i32
    %55 = vector.broadcast %c11_i32_15 : i32 to vector<4x24xi32>
    %56 = arith.addi %44, %55 : vector<4x24xi32>
    %57 = arith.select %52, %54, %56 : vector<4x24xi1>, vector<4x24xi32>
    %58 = arith.select %48, %50, %57 : vector<4x24xi1>, vector<4x24xi32>
    %59 = arith.select %46, %44, %58 : vector<4x24xi1>, vector<4x24xi32>
    %60 = arith.cmpi sge, %42, %59 : vector<4x24xi32>
    %c0_i32_16 = arith.constant 0 : i32
    %61 = vector.broadcast %c0_i32_16 : i32 to vector<4x24xi32>
    %c0_i32_17 = arith.constant 0 : i32
    %62 = vector.broadcast %c0_i32_17 : i32 to vector<4x24xi32>
    %63 = arith.cmpi eq, %43, %62 : vector<4x24xi32>
    %c3_i32_18 = arith.constant 3 : i32
    %64 = vector.broadcast %c3_i32_18 : i32 to vector<4x24xi32>
    %65 = arith.addi %61, %64 : vector<4x24xi32>
    %c1_i32_19 = arith.constant 1 : i32
    %66 = vector.broadcast %c1_i32_19 : i32 to vector<4x24xi32>
    %67 = arith.cmpi eq, %43, %66 : vector<4x24xi32>
    %c6_i32_20 = arith.constant 6 : i32
    %68 = vector.broadcast %c6_i32_20 : i32 to vector<4x24xi32>
    %69 = arith.addi %61, %68 : vector<4x24xi32>
    %c2_i32_21 = arith.constant 2 : i32
    %70 = vector.broadcast %c2_i32_21 : i32 to vector<4x24xi32>
    %71 = arith.cmpi eq, %43, %70 : vector<4x24xi32>
    %c11_i32_22 = arith.constant 11 : i32
    %72 = vector.broadcast %c11_i32_22 : i32 to vector<4x24xi32>
    %73 = arith.addi %61, %72 : vector<4x24xi32>
    %c16_i32_23 = arith.constant 16 : i32
    %74 = vector.broadcast %c16_i32_23 : i32 to vector<4x24xi32>
    %75 = arith.addi %61, %74 : vector<4x24xi32>
    %76 = arith.select %71, %73, %75 : vector<4x24xi1>, vector<4x24xi32>
    %77 = arith.select %67, %69, %76 : vector<4x24xi1>, vector<4x24xi32>
    %78 = arith.select %63, %65, %77 : vector<4x24xi1>, vector<4x24xi32>
    %79 = arith.cmpi slt, %42, %78 : vector<4x24xi32>
    %80 = arith.andi %60, %79 : vector<4x24xi1>
    %81 = arith.extui %80 : vector<4x24xi1> to vector<4x24xi32>
    %82 = arith.sitofp %81 : vector<4x24xi32> to vector<4x24xf32>
    %83 = tpu.iota {dimensions = array<i32: 1>} : vector<1x4xi32>
    %c0_i32_24 = arith.constant 0 : i32
    %84 = vector.broadcast %c0_i32_24 : i32 to vector<1x4xi32>
    %c0_i32_25 = arith.constant 0 : i32
    %85 = vector.broadcast %c0_i32_25 : i32 to vector<1x4xi32>
    %86 = arith.cmpi eq, %83, %85 : vector<1x4xi32>
    %c3_i32_26 = arith.constant 3 : i32
    %87 = vector.broadcast %c3_i32_26 : i32 to vector<1x4xi32>
    %88 = arith.addi %84, %87 : vector<1x4xi32>
    %c1_i32_27 = arith.constant 1 : i32
    %89 = vector.broadcast %c1_i32_27 : i32 to vector<1x4xi32>
    %90 = arith.cmpi eq, %83, %89 : vector<1x4xi32>
    %c6_i32_28 = arith.constant 6 : i32
    %91 = vector.broadcast %c6_i32_28 : i32 to vector<1x4xi32>
    %92 = arith.addi %84, %91 : vector<1x4xi32>
    %c2_i32_29 = arith.constant 2 : i32
    %93 = vector.broadcast %c2_i32_29 : i32 to vector<1x4xi32>
    %94 = arith.cmpi eq, %83, %93 : vector<1x4xi32>
    %c11_i32_30 = arith.constant 11 : i32
    %95 = vector.broadcast %c11_i32_30 : i32 to vector<1x4xi32>
    %96 = arith.addi %84, %95 : vector<1x4xi32>
    %c16_i32_31 = arith.constant 16 : i32
    %97 = vector.broadcast %c16_i32_31 : i32 to vector<1x4xi32>
    %98 = arith.addi %84, %97 : vector<1x4xi32>
    %99 = arith.select %94, %96, %98 : vector<1x4xi1>, vector<1x4xi32>
    %100 = arith.select %90, %92, %99 : vector<1x4xi1>, vector<1x4xi32>
    %101 = arith.select %86, %88, %100 : vector<1x4xi1>, vector<1x4xi32>
    %c0_i32_32 = arith.constant 0 : i32
    %102 = vector.broadcast %c0_i32_32 : i32 to vector<1x4xi32>
    %c0_i32_33 = arith.constant 0 : i32
    %103 = vector.broadcast %c0_i32_33 : i32 to vector<1x4xi32>
    %104 = arith.cmpi eq, %83, %103 : vector<1x4xi32>
    %c1_i32_34 = arith.constant 1 : i32
    %105 = vector.broadcast %c1_i32_34 : i32 to vector<1x4xi32>
    %106 = arith.cmpi eq, %83, %105 : vector<1x4xi32>
    %c3_i32_35 = arith.constant 3 : i32
    %107 = vector.broadcast %c3_i32_35 : i32 to vector<1x4xi32>
    %108 = arith.addi %102, %107 : vector<1x4xi32>
    %c2_i32_36 = arith.constant 2 : i32
    %109 = vector.broadcast %c2_i32_36 : i32 to vector<1x4xi32>
    %110 = arith.cmpi eq, %83, %109 : vector<1x4xi32>
    %c6_i32_37 = arith.constant 6 : i32
    %111 = vector.broadcast %c6_i32_37 : i32 to vector<1x4xi32>
    %112 = arith.addi %102, %111 : vector<1x4xi32>
    %c11_i32_38 = arith.constant 11 : i32
    %113 = vector.broadcast %c11_i32_38 : i32 to vector<1x4xi32>
    %114 = arith.addi %102, %113 : vector<1x4xi32>
    %115 = arith.select %110, %112, %114 : vector<1x4xi1>, vector<1x4xi32>
    %116 = arith.select %106, %108, %115 : vector<1x4xi1>, vector<1x4xi32>
    %117 = arith.select %104, %102, %116 : vector<1x4xi1>, vector<1x4xi32>
    %118 = arith.subi %101, %117 : vector<1x4xi32>
    %119 = arith.sitofp %118 : vector<1x4xi32> to vector<1x4xf32>
    %cst = arith.constant 1.000000e+00 : f32
    %120 = vector.broadcast %cst : f32 to vector<1x4xf32>
    %121 = arith.divf %120, %119 : vector<1x4xf32>
    %cst_39 = arith.constant dense<0.000000e+00> : vector<56x4xf32>
    %122 = tpu.matmul %0, %41, %cst_39 {dimension_numbers = #tpu.dot_dimension_numbers<[1], [0], [0], [1], [0, 0, 1, 1], [], []>} : vector<56x24xf32>, vector<24x4xf32>, vector<56x4xf32> -> vector<56x4xf32>
    %123 = vector.broadcast %121 : vector<1x4xf32> to vector<56x4xf32>
    %124 = arith.mulf %122, %123 : vector<56x4xf32>
    %cst_40 = arith.constant dense<0.000000e+00> : vector<56x24xf32>
    %125 = tpu.matmul %124, %82, %cst_40 {dimension_numbers = #tpu.dot_dimension_numbers<[1], [0], [0], [1], [0, 0, 1, 1], [], []>} : vector<56x4xf32>, vector<4x24xf32>, vector<56x24xf32> -> vector<56x24xf32>
    %126 = arith.subf %0, %125 : vector<56x24xf32>
    %127 = arith.mulf %126, %126 : vector<56x24xf32>
    %cst_41 = arith.constant dense<0.000000e+00> : vector<56x4xf32>
    %128 = tpu.matmul %127, %41, %cst_41 {dimension_numbers = #tpu.dot_dimension_numbers<[1], [0], [0], [1], [0, 0, 1, 1], [], []>} : vector<56x24xf32>, vector<24x4xf32>, vector<56x4xf32> -> vector<56x4xf32>
    %129 = vector.broadcast %121 : vector<1x4xf32> to vector<56x4xf32>
    %130 = arith.mulf %128, %129 : vector<56x4xf32>
    %cst_42 = arith.constant 9.99999974E-6 : f32
    %131 = vector.broadcast %cst_42 : f32 to vector<56x4xf32>
    %132 = arith.addf %130, %131 : vector<56x4xf32>
    %133 = math.rsqrt %132 : vector<56x4xf32>
    %cst_43 = arith.constant dense<0.000000e+00> : vector<56x24xf32>
    %134 = tpu.matmul %133, %82, %cst_43 {dimension_numbers = #tpu.dot_dimension_numbers<[1], [0], [0], [1], [0, 0, 1, 1], [], []>} : vector<56x4xf32>, vector<4x24xf32>, vector<56x24xf32> -> vector<56x24xf32>
    %135 = tpu.iota {dimensions = array<i32: 1>} : vector<56x24xi32>
    %c16_i32_44 = arith.constant 16 : i32
    %136 = vector.broadcast %c16_i32_44 : i32 to vector<56x24xi32>
    %137 = arith.cmpi slt, %135, %136 : vector<56x24xi32>
    %138 = arith.mulf %126, %134 : vector<56x24xf32>
    %139 = arith.select %137, %138, %0 : vector<56x24xi1>, vector<56x24xf32>
    %c0_45 = arith.constant 0 : index
    %c0_46 = arith.constant 0 : index
    %140 = vector.load %arg2[%c0_45, %c0_46] : memref<24x48xf32, #tpu.memory_space<vmem>>, vector<24x48xf32>
    %cst_47 = arith.constant dense<0.000000e+00> : vector<56x48xf32>
    %141 = tpu.matmul %139, %140, %cst_47 {dimension_numbers = #tpu.dot_dimension_numbers<[1], [0], [0], [1], [0, 0, 1, 1], [], []>} : vector<56x24xf32>, vector<24x48xf32>, vector<56x48xf32> -> vector<56x48xf32>
    %c0_48 = arith.constant 0 : index
    %c0_49 = arith.constant 0 : index
    %142 = vector.load %arg3[%c0_48, %c0_49] : memref<1x48xf32, #tpu.memory_space<vmem>>, vector<1x48xf32>
    %143 = vector.broadcast %142 : vector<1x48xf32> to vector<56x48xf32>
    %144 = arith.addf %141, %143 : vector<56x48xf32>
    %145 = math.tanh %144 : vector<56x48xf32>
    %c0_50 = arith.constant 0 : index
    %c0_51 = arith.constant 0 : index
    %146 = vector.load %arg4[%c0_50, %c0_51] : memref<48x36xf32, #tpu.memory_space<vmem>>, vector<48x36xf32>
    %cst_52 = arith.constant dense<0.000000e+00> : vector<56x36xf32>
    %147 = tpu.matmul %145, %146, %cst_52 {dimension_numbers = #tpu.dot_dimension_numbers<[1], [0], [0], [1], [0, 0, 1, 1], [], []>} : vector<56x48xf32>, vector<48x36xf32>, vector<56x36xf32> -> vector<56x36xf32>
    %c0_53 = arith.constant 0 : index
    %c0_54 = arith.constant 0 : index
    %148 = vector.load %arg5[%c0_53, %c0_54] : memref<1x36xf32, #tpu.memory_space<vmem>>, vector<1x36xf32>
    %149 = vector.broadcast %148 : vector<1x36xf32> to vector<56x36xf32>
    %150 = arith.addf %147, %149 : vector<56x36xf32>
    %151 = math.tanh %150 : vector<56x36xf32>
    %c0_55 = arith.constant 0 : index
    %c0_56 = arith.constant 0 : index
    %152 = vector.load %arg6[%c0_55, %c0_56] : memref<36x36xf32, #tpu.memory_space<vmem>>, vector<36x36xf32>
    %cst_57 = arith.constant dense<0.000000e+00> : vector<56x36xf32>
    %153 = tpu.matmul %151, %152, %cst_57 {dimension_numbers = #tpu.dot_dimension_numbers<[1], [0], [0], [1], [0, 0, 1, 1], [], []>} : vector<56x36xf32>, vector<36x36xf32>, vector<56x36xf32> -> vector<56x36xf32>
    %c0_58 = arith.constant 0 : index
    %c0_59 = arith.constant 0 : index
    %154 = vector.load %arg7[%c0_58, %c0_59] : memref<1x36xf32, #tpu.memory_space<vmem>>, vector<1x36xf32>
    %155 = vector.broadcast %154 : vector<1x36xf32> to vector<56x36xf32>
    %156 = arith.addf %153, %155 : vector<56x36xf32>
    %157 = math.tanh %156 : vector<56x36xf32>
    %c0_60 = arith.constant 0 : index
    %c0_61 = arith.constant 0 : index
    %158 = vector.load %arg8[%c0_60, %c0_61] : memref<36x8xf32, #tpu.memory_space<vmem>>, vector<36x8xf32>
    %cst_62 = arith.constant dense<0.000000e+00> : vector<56x8xf32>
    %159 = tpu.matmul %157, %158, %cst_62 {dimension_numbers = #tpu.dot_dimension_numbers<[1], [0], [0], [1], [0, 0, 1, 1], [], []>} : vector<56x36xf32>, vector<36x8xf32>, vector<56x8xf32> -> vector<56x8xf32>
    %c0_63 = arith.constant 0 : index
    %c0_64 = arith.constant 0 : index
    %160 = vector.load %arg9[%c0_63, %c0_64] : memref<1x8xf32, #tpu.memory_space<vmem>>, vector<1x8xf32>
    %161 = vector.broadcast %160 : vector<1x8xf32> to vector<56x8xf32>
    %162 = arith.addf %159, %161 : vector<56x8xf32>
    %c0_65 = arith.constant 0 : index
    %c0_66 = arith.constant 0 : index
    %163 = vector.load %arg10[%c0_65, %c0_66] : memref<56x8xf32, #tpu.memory_space<vmem>>, vector<56x8xf32>
    tpu.vector_store %arg10[%c0_65, %c0_66], %162 {strides = array<i32>} : memref<56x8xf32, #tpu.memory_space<vmem>>, vector<56x8xf32>,
    return
  }
  func.func @transform_0(%arg0: i32) -> (i32, i32) {
    %c0_i32 = arith.constant 0 : i32
    %c0_i32_0 = arith.constant 0 : i32
    return %arg0, %c0_i32 : i32, i32
  }
  func.func @transform_1(%arg0: i32) -> (i32, i32) {
    %c0_i32 = arith.constant 0 : i32
    %c0_i32_0 = arith.constant 0 : i32
    %c0_i32_1 = arith.constant 0 : i32
    return %c0_i32, %c0_i32_0 : i32, i32
  }
  func.func @transform_2(%arg0: i32) -> (i32, i32) {
    %c0_i32 = arith.constant 0 : i32
    %c0_i32_0 = arith.constant 0 : i32
    %c0_i32_1 = arith.constant 0 : i32
    return %c0_i32, %c0_i32_0 : i32, i32
  }
  func.func @transform_3(%arg0: i32) -> (i32, i32) {
    %c0_i32 = arith.constant 0 : i32
    %c0_i32_0 = arith.constant 0 : i32
    %c0_i32_1 = arith.constant 0 : i32
    return %c0_i32, %c0_i32_0 : i32, i32
  }
  func.func @transform_4(%arg0: i32) -> (i32, i32) {
    %c0_i32 = arith.constant 0 : i32
    %c0_i32_0 = arith.constant 0 : i32
    %c0_i32_1 = arith.constant 0 : i32
    return %c0_i32, %c0_i32_0 : i32, i32
  }
  func.func @transform_5(%arg0: i32) -> (i32, i32) {
    %c0_i32 = arith.constant 0 : i32
    %c0_i32_0 = arith.constant 0 : i32
    %c0_i32_1 = arith.constant 0 : i32
    return %c0_i32, %c0_i32_0 : i32, i32
  }
  func.func @transform_6(%arg0: i32) -> (i32, i32) {
    %c0_i32 = arith.constant 0 : i32
    %c0_i32_0 = arith.constant 0 : i32
    %c0_i32_1 = arith.constant 0 : i32
    return %c0_i32, %c0_i32_0 : i32, i32
  }
  func.func @transform_7(%arg0: i32) -> (i32, i32) {
    %c0_i32 = arith.constant 0 : i32
    %c0_i32_0 = arith.constant 0 : i32
    %c0_i32_1 = arith.constant 0 : i32
    return %c0_i32, %c0_i32_0 : i32, i32
  }
  func.func @transform_8(%arg0: i32) -> (i32, i32) {
    %c0_i32 = arith.constant 0 : i32
    %c0_i32_0 = arith.constant 0 : i32
    %c0_i32_1 = arith.constant 0 : i32
    return %c0_i32, %c0_i32_0 : i32, i32
  }
  func.func @transform_9(%arg0: i32) -> (i32, i32) {
    %c0_i32 = arith.constant 0 : i32
    %c0_i32_0 = arith.constant 0 : i32
    return %arg0, %c0_i32 : i32, i32
  }
}

</mosaic_0001>

<llo_original>
// kernel: tpu_custom_call.1
$region0: #{tpu_custom_call.1}
  #allocation0 [shape = 'u32[]', space=smem, size = 0x4, offset = 0x4, fixed_abs, tag = 'smem constant byte address 0x4 - core index']
  #allocation1 [shape = 'u32[72,128]{1,0:T(1,128)}', space=vmem, size = 0x9000, scoped, tag = 'internal scratch']
  %s0 = inlined_call_operand.vmem [shape: f32[56,24], index: 0, kind: input, shape index: {}]
  %s1 = inlined_call_operand.vmem [shape: f32[24,48], index: 1, kind: input, shape index: {}]
  %s2 = inlined_call_operand.vmem [shape: f32[1,48], index: 2, kind: input, shape index: {}]
  %s3 = inlined_call_operand.vmem [shape: f32[48,36], index: 3, kind: input, shape index: {}]
  %s4 = inlined_call_operand.vmem [shape: f32[1,36], index: 4, kind: input, shape index: {}]
  %s5 = inlined_call_operand.vmem [shape: f32[36,36], index: 5, kind: input, shape index: {}]
  %s6 = inlined_call_operand.vmem [shape: f32[1,36], index: 6, kind: input, shape index: {}]
  %s7 = inlined_call_operand.vmem [shape: f32[36,8], index: 7, kind: input, shape index: {}]
  %s8 = inlined_call_operand.vmem [shape: f32[1,8], index: 8, kind: input, shape index: {}]
  %s9 = inlined_call_operand.vmem [shape: f32[56,8], index: 9, kind: output, shape index: {}]
  %s10 = sld [smem:[#allocation0]]
  $region46: #{tpu_custom_call.1} parent=0
    _
  %s12 = ssub.s32 1, %s10
  %s13 = scalar_select 0, %s12, %s10
  // Predicated region
  $region2: #{tpu_custom_call.1} parent=0 // pred_check
    _
  $region3: #{tpu_custom_call.1} parent=0 // pred_check_branch
    %15 = sbr.rel (0) target = $region5
  $region4: #{tpu_custom_call.1} parent=0 // pred_region
    _
  $region5: #{tpu_custom_call.1} parent=0 // pred_fallthru
    _
  // Predicated region
  $region6: #{tpu_custom_call.1} parent=0 // pred_check
    _
  $region7: #{tpu_custom_call.1} parent=0 // pred_check_branch
    %17 = sbr.rel (0) target = $region9
  $region8: #{tpu_custom_call.1} parent=0 // pred_region
    _
  $region9: #{tpu_custom_call.1} parent=0 // pred_fallthru
    _
  // Predicated region
  $region10: #{tpu_custom_call.1} parent=0 // pred_check
    _
  $region11: #{tpu_custom_call.1} parent=0 // pred_check_branch
    %19 = sbr.rel (0) target = $region13
  $region12: #{tpu_custom_call.1} parent=0 // pred_region
    _
  $region13: #{tpu_custom_call.1} parent=0 // pred_fallthru
    _
  // Predicated region
  $region14: #{tpu_custom_call.1} parent=0 // pred_check
    _
  $region15: #{tpu_custom_call.1} parent=0 // pred_check_branch
    %21 = sbr.rel (0) target = $region17
  $region16: #{tpu_custom_call.1} parent=0 // pred_region
    _
  $region17: #{tpu_custom_call.1} parent=0 // pred_fallthru
    _
  // Predicated region
  $region18: #{tpu_custom_call.1} parent=0 // pred_check
    _
  $region19: #{tpu_custom_call.1} parent=0 // pred_check_branch
    %23 = sbr.rel (0) target = $region21
  $region20: #{tpu_custom_call.1} parent=0 // pred_region
    _
  $region21: #{tpu_custom_call.1} parent=0 // pred_fallthru
    _
  // Predicated region
  $region22: #{tpu_custom_call.1} parent=0 // pred_check
    _
  $region23: #{tpu_custom_call.1} parent=0 // pred_check_branch
    %25 = sbr.rel (0) target = $region25
  $region24: #{tpu_custom_call.1} parent=0 // pred_region
    _
  $region25: #{tpu_custom_call.1} parent=0 // pred_fallthru
    _
  // Predicated region
  $region26: #{tpu_custom_call.1} parent=0 // pred_check
    _
  $region27: #{tpu_custom_call.1} parent=0 // pred_check_branch
    %27 = sbr.rel (0) target = $region29
  $region28: #{tpu_custom_call.1} parent=0 // pred_region
    _
  $region29: #{tpu_custom_call.1} parent=0 // pred_fallthru
    _
  // Predicated region
  $region30: #{tpu_custom_call.1} parent=0 // pred_check
    _
  $region31: #{tpu_custom_call.1} parent=0 // pred_check_branch
    %29 = sbr.rel (0) target = $region33
  $region32: #{tpu_custom_call.1} parent=0 // pred_region
    _
  $region33: #{tpu_custom_call.1} parent=0 // pred_fallthru
    _
  // Predicated region
  $region34: #{tpu_custom_call.1} parent=0 // pred_check
    _
  $region35: #{tpu_custom_call.1} parent=0 // pred_check_branch
    %31 = sbr.rel (0) target = $region37
  $region36: #{tpu_custom_call.1} parent=0 // pred_region
    _
  $region37: #{tpu_custom_call.1} parent=0 // pred_fallthru
    _
  %v32 = vld [vmem:[%s0] sm:$0xff]
  %v33 = vld [vmem:[%s0 + $0x8] sm:$0xff]
  %v34 = vld [vmem:[%s0 + $0x10] sm:$0xff]
  %v35 = vld [vmem:[%s0 + $0x18] sm:$0xff]
  %v36 = vld [vmem:[%s0 + $0x20] sm:$0xff]
  %v37 = vld [vmem:[%s0 + $0x28] sm:$0xff]
  %v38 = vld [vmem:[%s0 + $0x30] sm:$0xff]
  %v39 = vlaneseq
  %v40 = vshrl.u32 %v39, 7
  %v41 = vadd.s32 %v40, 8
  %v42 = vadd.s32 %v40, 16
  %v43 = vlaneseq
  %v44 = vand.u32 %v43, 127
  %vm45 = vcmp.eq.s32.totalorder %v44, 0
  %vm46 = vcmp.eq.s32.totalorder %v44, 1
  %vm47 = vcmp.eq.s32.totalorder %v44, 2
  %v48 = vsel %vm47, 6, 11
  %v49 = vsel %vm46, 3, %v48
  %v50 = vsel %vm45, 0, %v49
  %vm51 = vcmp.ge.s32.totalorder %v40, %v50
  %vm52 = vcmp.ge.s32.totalorder %v41, %v50
  %vm53 = vcmp.ge.s32.totalorder %v42, %v50
  %v54 = vsel %vm47, 11, 16
  %v55 = vsel %vm46, 6, %v54
  %v56 = vsel %vm45, 3, %v55
  %vm57 = vcmp.lt.s32.totalorder %v40, %v56
  %vm58 = vcmp.lt.s32.totalorder %v41, %v56
  %vm59 = vcmp.lt.s32.totalorder %v42, %v56
  %vm60 = vmand %vm51, %vm57
  %vm61 = vmand %vm52, %vm58
  %vm62 = vmand %vm53, %vm59
  %v63 = vsel %vm60, 1, 0
  %v64 = vsel %vm61, 1, 0
  %v65 = vsel %vm62, 1, 0
  %v66 = vcvt.s32.f32 %v63
  %v67 = vcvt.s32.f32 %v64
  %v68 = vcvt.s32.f32 %v65
  %vm69 = vcmp.eq.s32.totalorder %v40, 0
  %vm70 = vcmp.eq.s32.totalorder %v40, 1
  %vm71 = vcmp.eq.s32.totalorder %v40, 2
  %v72 = vsel %vm71, 6, 11
  %v73 = vsel %vm70, 3, %v72
  %v74 = vsel %vm69, 0, %v73
  %vm75 = vcmp.ge.s32.totalorder %v44, %v74
  %v76 = vsel %vm71, 11, 16
  %v77 = vsel %vm70, 6, %v76
  %v78 = vsel %vm69, 3, %v77
  %vm79 = vcmp.lt.s32.totalorder %v44, %v78
  %vm80 = vmand %vm75, %vm79
  %v81 = vsel %vm80, 1, 0
  %v82 = vcvt.s32.f32 %v81
  %v83 = vsub.s32 %v56, %v50
  %v84 = vcvt.s32.f32 %v83
  %v85 = vrcp.pop %v84
  %v86 = vmul.f32 %v84, %v85
  %v87 = vsub.f32 1.0, %v86
  %v88 = vmul.f32 %v85, %v87
  %v89 = vadd.f32 %v85, %v88
  %vm90 = vweird.f32 %v84
  %vm91 = vweird.f32 %v85
  %vm92 = vmor %vm90, %vm91
  %v93 = vsel %vm92, %v85, %v89
  %v94 = vand.u32 2147483647, %v84
  %vm95 = vcmp.eq.f32.partialorder %v94, 8.507059e+37
  %v96 = vand.u32 %v84, 2147483648
  %v97 = vor.u32 1.1754944e-38, %v96
  %v98 = vsel %vm95, %v97, %v93
  %v99 = vmul.f32 1.0, %v98
  %vm100 = vcmask 195584
  %v102 = vsel %vm100, %v32, 0
  %v105 = vsel %vm100, %v33, 0
  %v108 = vsel %vm100, %v34, 0
  %v111 = vsel %vm100, %v35, 0
  %v114 = vsel %vm100, %v36, 0
  %v117 = vsel %vm100, %v37, 0
  %v120 = vsel %vm100, %v38, 0
  %122 = vmatpush.msra.mxu0 0.0
  %123 = vmatpush.msra.mxu0 0.0
  %124 = vmatpush.msra.mxu0 0.0
  %125 = vmatpush.msra.mxu0 0.0
  %126 = vmatpush.msra.mxu0 0.0
  %127 = vmatpush.msra.mxu0 0.0
  %128 = vmatpush.msra.mxu0 0.0
  %129 = vmatpush.msra.mxu0 0.0
  %130 = vmatpush.msra.mxu0 0.0
  %131 = vmatpush.msra.mxu0 0.0
  %132 = vmatpush.msra.mxu0 0.0
  %133 = vmatpush.msra.mxu0 0.0
  %134 = vmatpush.msra.mxu0 0.0
  %135 = vmatpush.msra.mxu0 %v68
  %136 = vmatpush.msra.mxu0 %v67
  %137 = vmatpush.msra.mxu0 %v66
  %138 = vmatmul.f32.gmra.mxu0 %v102
  %v139 = vpop.f32.mrf.mxu0
  %v140 = vadd.f32 0.0, %v139
  %141 = vmatmul.f32.gmra.mxu0 %v105
  %v142 = vpop.f32.mrf.mxu0
  %v143 = vadd.f32 0.0, %v142
  %144 = vmatmul.f32.gmra.mxu0 %v108
  %v145 = vpop.f32.mrf.mxu0
  %v146 = vadd.f32 0.0, %v145
  %147 = vmatmul.f32.gmra.mxu0 %v111
  %v148 = vpop.f32.mrf.mxu0
  %v149 = vadd.f32 0.0, %v148
  %150 = vmatmul.f32.gmra.mxu0 %v114
  %v151 = vpop.f32.mrf.mxu0
  %v152 = vadd.f32 0.0, %v151
  %153 = vmatmul.f32.gmra.mxu0 %v117
  %v154 = vpop.f32.mrf.mxu0
  %v155 = vadd.f32 0.0, %v154
  %156 = vmatmul.f32.gmra.mxu0 %v120
  %v157 = vpop.f32.mrf.mxu0
  %v158 = vadd.f32 0.0, %v157
  %159 = vdwg.mxu0
  %v160 = vmul.f32 %v140, %v99
  %v161 = vmul.f32 %v143, %v99
  %v162 = vmul.f32 %v146, %v99
  %v163 = vmul.f32 %v149, %v99
  %v164 = vmul.f32 %v152, %v99
  %v165 = vmul.f32 %v155, %v99
  %v166 = vmul.f32 %v158, %v99
  %vm167 = vcmask 31744
  %v169 = vsel %vm167, %v160, 0
  %v172 = vsel %vm167, %v161, 0
  %v175 = vsel %vm167, %v162, 0
  %v178 = vsel %vm167, %v163, 0
  %v181 = vsel %vm167, %v164, 0
  %v184 = vsel %vm167, %v165, 0
  %v187 = vsel %vm167, %v166, 0
  %vm189 = vcmask 1043456
  %v191 = vsel %vm189, %v82, 0
  %193 = vmatpush.msra.mxu0 0.0
  %194 = vmatpush.msra.mxu0 0.0
  %195 = vmatpush.msra.mxu0 0.0
  %196 = vmatpush.msra.mxu0 0.0
  %197 = vmatpush.msra.mxu0 0.0
  %198 = vmatpush.msra.mxu0 0.0
  %199 = vmatpush.msra.mxu0 0.0
  %200 = vmatpush.msra.mxu0 0.0
  %201 = vmatpush.msra.mxu0 0.0
  %202 = vmatpush.msra.mxu0 0.0
  %203 = vmatpush.msra.mxu0 0.0
  %204 = vmatpush.msra.mxu0 0.0
  %205 = vmatpush.msra.mxu0 0.0
  %206 = vmatpush.msra.mxu0 0.0
  %207 = vmatpush.msra.mxu0 0.0
  %208 = vmatpush.msra.mxu0 %v191
  %209 = vmatmul.f32.gmra.mxu0 %v169
  %v210 = vpop.f32.mrf.mxu0
  %v211 = vadd.f32 0.0, %v210
  %212 = vmatmul.f32.gmra.mxu0 %v172
  %v213 = vpop.f32.mrf.mxu0
  %v214 = vadd.f32 0.0, %v213
  %215 = vmatmul.f32.gmra.mxu0 %v175
  %v216 = vpop.f32.mrf.mxu0
  %v217 = vadd.f32 0.0, %v216
  %218 = vmatmul.f32.gmra.mxu0 %v178
  %v219 = vpop.f32.mrf.mxu0
  %v220 = vadd.f32 0.0, %v219
  %221 = vmatmul.f32.gmra.mxu0 %v181
  %v222 = vpop.f32.mrf.mxu0
  %v223 = vadd.f32 0.0, %v222
  %224 = vmatmul.f32.gmra.mxu0 %v184
  %v225 = vpop.f32.mrf.mxu0
  %v226 = vadd.f32 0.0, %v225
  %227 = vmatmul.f32.gmra.mxu0 %v187
  %v228 = vpop.f32.mrf.mxu0
  %v229 = vadd.f32 0.0, %v228
  %230 = vdwg.mxu0
  %v231 = vsub.f32 %v32, %v211
  %v232 = vsub.f32 %v33, %v214
  %v233 = vsub.f32 %v34, %v217
  %v234 = vsub.f32 %v35, %v220
  %v235 = vsub.f32 %v36, %v223
  %v236 = vsub.f32 %v37, %v226
  %v237 = vsub.f32 %v38, %v229
  %v238 = vmul.f32 %v231, %v231
  %v239 = vmul.f32 %v232, %v232
  %v240 = vmul.f32 %v233, %v233
  %v241 = vmul.f32 %v234, %v234
  %v242 = vmul.f32 %v235, %v235
  %v243 = vmul.f32 %v236, %v236
  %v244 = vmul.f32 %v237, %v237
  %v246 = vsel %vm100, %v238, 0
  %v249 = vsel %vm100, %v239, 0
  %v252 = vsel %vm100, %v240, 0
  %v255 = vsel %vm100, %v241, 0
  %v258 = vsel %vm100, %v242, 0
  %v261 = vsel %vm100, %v243, 0
  %v264 = vsel %vm100, %v244, 0
  %266 = vmatpush.msra.mxu0 0.0
  %267 = vmatpush.msra.mxu0 0.0
  %268 = vmatpush.msra.mxu0 0.0
  %269 = vmatpush.msra.mxu0 0.0
  %270 = vmatpush.msra.mxu0 0.0
  %271 = vmatpush.msra.mxu0 0.0
  %272 = vmatpush.msra.mxu0 0.0
  %273 = vmatpush.msra.mxu0 0.0
  %274 = vmatpush.msra.mxu0 0.0
  %275 = vmatpush.msra.mxu0 0.0
  %276 = vmatpush.msra.mxu0 0.0
  %277 = vmatpush.msra.mxu0 0.0
  %278 = vmatpush.msra.mxu0 0.0
  %279 = vmatpush.msra.mxu0 %v68
  %280 = vmatpush.msra.mxu0 %v67
  %281 = vmatpush.msra.mxu0 %v66
  %282 = vmatmul.f32.gmra.mxu0 %v246
  %v283 = vpop.f32.mrf.mxu0
  %v284 = vadd.f32 0.0, %v283
  %285 = vmatmul.f32.gmra.mxu0 %v249
  %v286 = vpop.f32.mrf.mxu0
  %v287 = vadd.f32 0.0, %v286
  %288 = vmatmul.f32.gmra.mxu0 %v252
  %v289 = vpop.f32.mrf.mxu0
  %v290 = vadd.f32 0.0, %v289
  %291 = vmatmul.f32.gmra.mxu0 %v255
  %v292 = vpop.f32.mrf.mxu0
  %v293 = vadd.f32 0.0, %v292
  %294 = vmatmul.f32.gmra.mxu0 %v258
  %v295 = vpop.f32.mrf.mxu0
  %v296 = vadd.f32 0.0, %v295
  %297 = vmatmul.f32.gmra.mxu0 %v261
  %v298 = vpop.f32.mrf.mxu0
  %v299 = vadd.f32 0.0, %v298
  %300 = vmatmul.f32.gmra.mxu0 %v264
  %v301 = vpop.f32.mrf.mxu0
  %v302 = vadd.f32 0.0, %v301
  %303 = vdwg.mxu0
  %v304 = vmul.f32 %v284, %v99
  %v305 = vmul.f32 %v287, %v99
  %v306 = vmul.f32 %v290, %v99
  %v307 = vmul.f32 %v293, %v99
  %v308 = vmul.f32 %v296, %v99
  %v309 = vmul.f32 %v299, %v99
  %v310 = vmul.f32 %v302, %v99
  %v311 = vadd.f32 %v304, 1e-05
  %v312 = vadd.f32 %v305, 1e-05
  %v313 = vadd.f32 %v306, 1e-05
  %v314 = vadd.f32 %v307, 1e-05
  %v315 = vadd.f32 %v308, 1e-05
  %v316 = vadd.f32 %v309, 1e-05
  %v317 = vadd.f32 %v310, 1e-05
  %v318 = vrsqrt.pop %v311
  %v319 = vmul.f32 %v318, %v311
  %v320 = vmul.f32 %v319, %v318
  %v321 = vmul.f32 0.5, %v320
  %v322 = vsub.f32 1.5, %v321
  %v323 = vmul.f32 %v318, %v322
  %vm324 = vweird.f32 %v311
  %vm325 = vweird.f32 %v318
  %vm326 = vmor %vm324, %vm325
  %v327 = vsel %vm326, %v318, %v323
  %v328 = vrsqrt.pop %v312
  %v329 = vmul.f32 %v328, %v312
  %v330 = vmul.f32 %v329, %v328
  %v331 = vmul.f32 0.5, %v330
  %v332 = vsub.f32 1.5, %v331
  %v333 = vmul.f32 %v328, %v332
  %vm334 = vweird.f32 %v312
  %vm335 = vweird.f32 %v328
  %vm336 = vmor %vm334, %vm335
  %v337 = vsel %vm336, %v328, %v333
  %v338 = vrsqrt.pop %v313
  %v339 = vmul.f32 %v338, %v313
  %v340 = vmul.f32 %v339, %v338
  %v341 = vmul.f32 0.5, %v340
  %v342 = vsub.f32 1.5, %v341
  %v343 = vmul.f32 %v338, %v342
  %vm344 = vweird.f32 %v313
  %vm345 = vweird.f32 %v338
  %vm346 = vmor %vm344, %vm345
  %v347 = vsel %vm346, %v338, %v343
  %v348 = vrsqrt.pop %v314
  %v349 = vmul.f32 %v348, %v314
  %v350 = vmul.f32 %v349, %v348
  %v351 = vmul.f32 0.5, %v350
  %v352 = vsub.f32 1.5, %v351
  %v353 = vmul.f32 %v348, %v352
  %vm354 = vweird.f32 %v314
  %vm355 = vweird.f32 %v348
  %vm356 = vmor %vm354, %vm355
  %v357 = vsel %vm356, %v348, %v353
  %v358 = vrsqrt.pop %v315
  %v359 = vmul.f32 %v358, %v315
  %v360 = vmul.f32 %v359, %v358
  %v361 = vmul.f32 0.5, %v360
  %v362 = vsub.f32 1.5, %v361
  %v363 = vmul.f32 %v358, %v362
  %vm364 = vweird.f32 %v315
  %vm365 = vweird.f32 %v358
  %vm366 = vmor %vm364, %vm365
  %v367 = vsel %vm366, %v358, %v363
  %v368 = vrsqrt.pop %v316
  %v369 = vmul.f32 %v368, %v316
  %v370 = vmul.f32 %v369, %v368
  %v371 = vmul.f32 0.5, %v370
  %v372 = vsub.f32 1.5, %v371
  %v373 = vmul.f32 %v368, %v372
  %vm374 = vweird.f32 %v316
  %vm375 = vweird.f32 %v368
  %vm376 = vmor %vm374, %vm375
  %v377 = vsel %vm376, %v368, %v373
  %v378 = vrsqrt.pop %v317
  %v379 = vmul.f32 %v378, %v317
  %v380 = vmul.f32 %v379, %v378
  %v381 = vmul.f32 0.5, %v380
  %v382 = vsub.f32 1.5, %v381
  %v383 = vmul.f32 %v378, %v382
  %vm384 = vweird.f32 %v317
  %vm385 = vweird.f32 %v378
  %vm386 = vmor %vm384, %vm385
  %v387 = vsel %vm386, %v378, %v383
  %v389 = vsel %vm167, %v327, 0
  %v392 = vsel %vm167, %v337, 0
  %v395 = vsel %vm167, %v347, 0
  %v398 = vsel %vm167, %v357, 0
  %v401 = vsel %vm167, %v367, 0
  %v404 = vsel %vm167, %v377, 0
  %v407 = vsel %vm167, %v387, 0
  %409 = vmatpush.msra.mxu0 0.0
  %410 = vmatpush.msra.mxu0 0.0
  %411 = vmatpush.msra.mxu0 0.0
  %412 = vmatpush.msra.mxu0 0.0
  %413 = vmatpush.msra.mxu0 0.0
  %414 = vmatpush.msra.mxu0 0.0
  %415 = vmatpush.msra.mxu0 0.0
  %416 = vmatpush.msra.mxu0 0.0
  %417 = vmatpush.msra.mxu0 0.0
  %418 = vmatpush.msra.mxu0 0.0
  %419 = vmatpush.msra.mxu0 0.0
  %420 = vmatpush.msra.mxu0 0.0
  %421 = vmatpush.msra.mxu0 0.0
  %422 = vmatpush.msra.mxu0 0.0
  %423 = vmatpush.msra.mxu0 0.0
  %424 = vmatpush.msra.mxu0 %v191
  %425 = vmatmul.f32.gmra.mxu0 %v389
  %v426 = vpop.f32.mrf.mxu0
  %v427 = vadd.f32 0.0, %v426
  %428 = vmatmul.f32.gmra.mxu0 %v392
  %v429 = vpop.f32.mrf.mxu0
  %v430 = vadd.f32 0.0, %v429
  %431 = vmatmul.f32.gmra.mxu0 %v395
  %v432 = vpop.f32.mrf.mxu0
  %v433 = vadd.f32 0.0, %v432
  %434 = vmatmul.f32.gmra.mxu0 %v398
  %v435 = vpop.f32.mrf.mxu0
  %v436 = vadd.f32 0.0, %v435
  %437 = vmatmul.f32.gmra.mxu0 %v401
  %v438 = vpop.f32.mrf.mxu0
  %v439 = vadd.f32 0.0, %v438
  %440 = vmatmul.f32.gmra.mxu0 %v404
  %v441 = vpop.f32.mrf.mxu0
  %v442 = vadd.f32 0.0, %v441
  %443 = vmatmul.f32.gmra.mxu0 %v407
  %v444 = vpop.f32.mrf.mxu0
  %v445 = vadd.f32 0.0, %v444
  %446 = vdwg.mxu0
  %vm447 = vcmp.lt.s32.totalorder %v44, 16
  %v448 = vmul.f32 %v231, %v427
  %v449 = vmul.f32 %v232, %v430
  %v450 = vmul.f32 %v233, %v433
  %v451 = vmul.f32 %v234, %v436
  %v452 = vmul.f32 %v235, %v439
  %v453 = vmul.f32 %v236, %v442
  %v454 = vmul.f32 %v237, %v445
  %v455 = vsel %vm447, %v448, %v32
  %v456 = vsel %vm447, %v449, %v33
  %v457 = vsel %vm447, %v450, %v34
  %v458 = vsel %vm447, %v451, %v35
  %v459 = vsel %vm447, %v452, %v36
  %v460 = vsel %vm447, %v453, %v37
  %v461 = vsel %vm447, %v454, %v38
  %v462 = vld [vmem:[%s1] sm:$0xff]
  %v463 = vld [vmem:[%s1 + $0x8] sm:$0xff]
  %v464 = vld [vmem:[%s1 + $0x10] sm:$0xff]
  %v465 = vld [vmem:[%s2] sm:$0x1]
  %v467 = vperm.slane %v465, 0
  %v470 = vsel %vm100, %v455, 0
  %v473 = vsel %vm100, %v456, 0
  %v476 = vsel %vm100, %v457, 0
  %v479 = vsel %vm100, %v458, 0
  %v482 = vsel %vm100, %v459, 0
  %v485 = vsel %vm100, %v460, 0
  %v488 = vsel %vm100, %v461, 0
  %490 = vmatpush.msra.mxu0 0.0
  %491 = vmatpush.msra.mxu0 0.0
  %492 = vmatpush.msra.mxu0 0.0
  %493 = vmatpush.msra.mxu0 0.0
  %494 = vmatpush.msra.mxu0 0.0
  %495 = vmatpush.msra.mxu0 0.0
  %496 = vmatpush.msra.mxu0 0.0
  %497 = vmatpush.msra.mxu0 0.0
  %498 = vmatpush.msra.mxu0 0.0
  %499 = vmatpush.msra.mxu0 0.0
  %500 = vmatpush.msra.mxu0 0.0
  %501 = vmatpush.msra.mxu0 0.0
  %502 = vmatpush.msra.mxu0 0.0
  %503 = vmatpush.msra.mxu0 %v464
  %504 = vmatpush.msra.mxu0 %v463
  %505 = vmatpush.msra.mxu0 %v462
  %506 = vmatmul.f32.gmra.mxu0 %v470
  %v507 = vpop.f32.mrf.mxu0
  %v508 = vadd.f32 %v467, %v507
  %509 = vmatmul.f32.gmra.mxu0 %v473
  %v510 = vpop.f32.mrf.mxu0
  %v511 = vadd.f32 %v467, %v510
  %512 = vmatmul.f32.gmra.mxu0 %v476
  %v513 = vpop.f32.mrf.mxu0
  %v514 = vadd.f32 %v467, %v513
  %515 = vmatmul.f32.gmra.mxu0 %v479
  %v516 = vpop.f32.mrf.mxu0
  %v517 = vadd.f32 %v467, %v516
  %518 = vmatmul.f32.gmra.mxu0 %v482
  %v519 = vpop.f32.mrf.mxu0
  %v520 = vadd.f32 %v467, %v519
  %521 = vmatmul.f32.gmra.mxu0 %v485
  %v522 = vpop.f32.mrf.mxu0
  %v523 = vadd.f32 %v467, %v522
  %524 = vmatmul.f32.gmra.mxu0 %v488
  %v525 = vpop.f32.mrf.mxu0
  %v526 = vadd.f32 %v467, %v525
  %527 = vdwg.mxu0
  %v528 = vtanh.pop %v508
  %v529 = vtanh.pop %v511
  %v530 = vtanh.pop %v514
  %v531 = vtanh.pop %v517
  %v532 = vtanh.pop %v520
  %v533 = vtanh.pop %v523
  %v534 = vtanh.pop %v526
  %v535 = vld [vmem:[%s3] sm:$0xff]
  %v536 = vld [vmem:[%s3 + $0x8] sm:$0xff]
  %v537 = vld [vmem:[%s3 + $0x10] sm:$0xff]
  %v538 = vld [vmem:[%s3 + $0x18] sm:$0xff]
  %v539 = vld [vmem:[%s3 + $0x20] sm:$0xff]
  %v540 = vld [vmem:[%s3 + $0x28] sm:$0xff]
  %v541 = vld [vmem:[%s4] sm:$0x1]
  %v543 = vperm.slane %v541, 0
  %vm545 = vcmask 392192
  %v547 = vsel %vm545, %v528, 0
  %v550 = vsel %vm545, %v529, 0
  %v553 = vsel %vm545, %v530, 0
  %v556 = vsel %vm545, %v531, 0
  %v559 = vsel %vm545, %v532, 0
  %v562 = vsel %vm545, %v533, 0
  %v565 = vsel %vm545, %v534, 0
  %567 = vmatpush.msra.mxu0 0.0
  %568 = vmatpush.msra.mxu0 0.0
  %569 = vmatpush.msra.mxu0 0.0
  %570 = vmatpush.msra.mxu0 0.0
  %571 = vmatpush.msra.mxu0 0.0
  %572 = vmatpush.msra.mxu0 0.0
  %573 = vmatpush.msra.mxu0 0.0
  %574 = vmatpush.msra.mxu0 0.0
  %575 = vmatpush.msra.mxu0 0.0
  %576 = vmatpush.msra.mxu0 0.0
  %577 = vmatpush.msra.mxu0 %v540
  %578 = vmatpush.msra.mxu0 %v539
  %579 = vmatpush.msra.mxu0 %v538
  %580 = vmatpush.msra.mxu0 %v537
  %581 = vmatpush.msra.mxu0 %v536
  %582 = vmatpush.msra.mxu0 %v535
  %583 = vmatmul.f32.gmra.mxu0 %v547
  %v584 = vpop.f32.mrf.mxu0
  %v585 = vadd.f32 %v543, %v584
  %586 = vmatmul.f32.gmra.mxu0 %v550
  %v587 = vpop.f32.mrf.mxu0
  %v588 = vadd.f32 %v543, %v587
  %589 = vmatmul.f32.gmra.mxu0 %v553
  %v590 = vpop.f32.mrf.mxu0
  %v591 = vadd.f32 %v543, %v590
  %592 = vmatmul.f32.gmra.mxu0 %v556
  %v593 = vpop.f32.mrf.mxu0
  %v594 = vadd.f32 %v543, %v593
  %595 = vmatmul.f32.gmra.mxu0 %v559
  %v596 = vpop.f32.mrf.mxu0
  %v597 = vadd.f32 %v543, %v596
  %598 = vmatmul.f32.gmra.mxu0 %v562
  %v599 = vpop.f32.mrf.mxu0
  %v600 = vadd.f32 %v543, %v599
  %601 = vmatmul.f32.gmra.mxu0 %v565
  %v602 = vpop.f32.mrf.mxu0
  %v603 = vadd.f32 %v543, %v602
  %604 = vdwg.mxu0
  %v605 = vtanh.pop %v585
  %v606 = vtanh.pop %v588
  %v607 = vtanh.pop %v591
  %v608 = vtanh.pop %v594
  %v609 = vtanh.pop %v597
  %v610 = vtanh.pop %v600
  %v611 = vtanh.pop %v603
  %v612 = vld [vmem:[%s5] sm:$0xff]
  %v613 = vld [vmem:[%s5 + $0x8] sm:$0xff]
  %v614 = vld [vmem:[%s5 + $0x10] sm:$0xff]
  %v615 = vld [vmem:[%s5 + $0x18] sm:$0xff]
  %v616 = vld [vmem:[%s5 + $0x20] sm:$0xf]
  %v617 = vld [vmem:[%s6] sm:$0x1]
  %v619 = vperm.slane %v617, 0
  %vm621 = vcmask 293888
  %v623 = vsel %vm621, %v605, 0
  %v626 = vsel %vm621, %v606, 0
  %v629 = vsel %vm621, %v607, 0
  %v632 = vsel %vm621, %v608, 0
  %v635 = vsel %vm621, %v609, 0
  %v638 = vsel %vm621, %v610, 0
  %v641 = vsel %vm621, %v611, 0
  %v644 = vsel %vm189, %v616, 0
  %646 = vmatpush.msra.mxu0 0.0
  %647 = vmatpush.msra.mxu0 0.0
  %648 = vmatpush.msra.mxu0 0.0
  %649 = vmatpush.msra.mxu0 0.0
  %650 = vmatpush.msra.mxu0 0.0
  %651 = vmatpush.msra.mxu0 0.0
  %652 = vmatpush.msra.mxu0 0.0
  %653 = vmatpush.msra.mxu0 0.0
  %654 = vmatpush.msra.mxu0 0.0
  %655 = vmatpush.msra.mxu0 0.0
  %656 = vmatpush.msra.mxu0 0.0
  %657 = vmatpush.msra.mxu0 %v644
  %658 = vmatpush.msra.mxu0 %v615
  %659 = vmatpush.msra.mxu0 %v614
  %660 = vmatpush.msra.mxu0 %v613
  %661 = vmatpush.msra.mxu0 %v612
  %662 = vmatmul.f32.gmra.mxu0 %v623
  %v663 = vpop.f32.mrf.mxu0
  %v664 = vadd.f32 %v619, %v663
  %665 = vmatmul.f32.gmra.mxu0 %v626
  %v666 = vpop.f32.mrf.mxu0
  %v667 = vadd.f32 %v619, %v666
  %668 = vmatmul.f32.gmra.mxu0 %v629
  %v669 = vpop.f32.mrf.mxu0
  %v670 = vadd.f32 %v619, %v669
  %671 = vmatmul.f32.gmra.mxu0 %v632
  %v672 = vpop.f32.mrf.mxu0
  %v673 = vadd.f32 %v619, %v672
  %674 = vmatmul.f32.gmra.mxu0 %v635
  %v675 = vpop.f32.mrf.mxu0
  %v676 = vadd.f32 %v619, %v675
  %677 = vmatmul.f32.gmra.mxu0 %v638
  %v678 = vpop.f32.mrf.mxu0
  %v679 = vadd.f32 %v619, %v678
  %680 = vmatmul.f32.gmra.mxu0 %v641
  %v681 = vpop.f32.mrf.mxu0
  %v682 = vadd.f32 %v619, %v681
  %683 = vdwg.mxu0
  %v684 = vtanh.pop %v664
  %v685 = vtanh.pop %v667
  %v686 = vtanh.pop %v670
  %v687 = vtanh.pop %v673
  %v688 = vtanh.pop %v676
  %v689 = vtanh.pop %v679
  %v690 = vtanh.pop %v682
  %v691 = vld [vmem:[%s7] sm:$0xff]
  %v692 = vld [vmem:[%s7 + $0x8] sm:$0xff]
  %v693 = vld [vmem:[%s7 + $0x10] sm:$0xff]
  %v694 = vld [vmem:[%s7 + $0x18] sm:$0xff]
  %v695 = vld [vmem:[%s7 + $0x20] sm:$0xf]
  %v696 = vld [vmem:[%s8] sm:$0x1]
  %v698 = vperm.slane %v696, 0
  %v701 = vsel %vm621, %v684, 0
  %v704 = vsel %vm621, %v685, 0
  %v707 = vsel %vm621, %v686, 0
  %v710 = vsel %vm621, %v687, 0
  %v713 = vsel %vm621, %v688, 0
  %v716 = vsel %vm621, %v689, 0
  %v719 = vsel %vm621, %v690, 0
  %v722 = vsel %vm189, %v695, 0
  %724 = vmatpush.msra.mxu0 0.0
  %725 = vmatpush.msra.mxu0 0.0
  %726 = vmatpush.msra.mxu0 0.0
  %727 = vmatpush.msra.mxu0 0.0
  %728 = vmatpush.msra.mxu0 0.0
  %729 = vmatpush.msra.mxu0 0.0
  %730 = vmatpush.msra.mxu0 0.0
  %731 = vmatpush.msra.mxu0 0.0
  %732 = vmatpush.msra.mxu0 0.0
  %733 = vmatpush.msra.mxu0 0.0
  %734 = vmatpush.msra.mxu0 0.0
  %735 = vmatpush.msra.mxu0 %v722
  %736 = vmatpush.msra.mxu0 %v694
  %737 = vmatpush.msra.mxu0 %v693
  %738 = vmatpush.msra.mxu0 %v692
  %739 = vmatpush.msra.mxu0 %v691
  %740 = vmatmul.f32.gmra.mxu0 %v701
  %v741 = vpop.f32.mrf.mxu0
  %v742 = vadd.f32 %v698, %v741
  %743 = vmatmul.f32.gmra.mxu0 %v704
  %v744 = vpop.f32.mrf.mxu0
  %v745 = vadd.f32 %v698, %v744
  %746 = vmatmul.f32.gmra.mxu0 %v707
  %v747 = vpop.f32.mrf.mxu0
  %v748 = vadd.f32 %v698, %v747
  %749 = vmatmul.f32.gmra.mxu0 %v710
  %v750 = vpop.f32.mrf.mxu0
  %v751 = vadd.f32 %v698, %v750
  %752 = vmatmul.f32.gmra.mxu0 %v713
  %v753 = vpop.f32.mrf.mxu0
  %v754 = vadd.f32 %v698, %v753
  %755 = vmatmul.f32.gmra.mxu0 %v716
  %v756 = vpop.f32.mrf.mxu0
  %v757 = vadd.f32 %v698, %v756
  %758 = vmatmul.f32.gmra.mxu0 %v719
  %v759 = vpop.f32.mrf.mxu0
  %v760 = vadd.f32 %v698, %v759
  %761 = vdwg.mxu0
  %vm762 = vcmask 64512
  %763 = vst.msk [vmem:[%s9] sm:$0xff] %vm762, %v742
  %764 = vst.msk [vmem:[%s9 + $0x8] sm:$0xff] %vm762, %v745
  %765 = vst.msk [vmem:[%s9 + $0x10] sm:$0xff] %vm762, %v748
  %766 = vst.msk [vmem:[%s9 + $0x18] sm:$0xff] %vm762, %v751
  %767 = vst.msk [vmem:[%s9 + $0x20] sm:$0xff] %vm762, %v754
  %768 = vst.msk [vmem:[%s9 + $0x28] sm:$0xff] %vm762, %v757
  %769 = vst.msk [vmem:[%s9 + $0x30] sm:$0xff] %vm762, %v760
  // Predicated region
  $region38: #{tpu_custom_call.1} parent=0 // pred_check
    _
  $region39: #{tpu_custom_call.1} parent=0 // pred_check_branch
    %771 = sbr.rel (0) target = $region41
  $region40: #{tpu_custom_call.1} parent=0 // pred_region
    _
  $region41: #{tpu_custom_call.1} parent=0 // pred_fallthru
    _
  // Predicated region
  $region42: #{tpu_custom_call.1} parent=0 // pred_check
    _
  $region43: #{tpu_custom_call.1} parent=0 // pred_check_branch
    %773 = sbr.rel (0) target = $region45
  $region44: #{tpu_custom_call.1} parent=0 // pred_region
    _
  $region45: #{tpu_custom_call.1} parent=0 // pred_fallthru
    _

</llo_original>
